<compile_context>
chip_gen: v7x
topology: tpu7x:2x2x1
jax: 0.10.0
libtpu: 0.0.40
codegen_flags: <defaults>
</compile_context>

<pallas_src>
import numpy as np

import jax
import jax.numpy as jnp
from jax import lax
from jax.experimental import pallas as pl
from jax.experimental.pallas import tpu as pltpu


# ------------------------------------------------------------------
# Filter construction (mirrors get_filter in the PyTorch module)
# ------------------------------------------------------------------
def get_filter_1d(filt_size=4):
    if filt_size == 1:
        a = np.array([1.0])
    elif filt_size == 2:
        a = np.array([1.0, 1.0])
    elif filt_size == 3:
        a = np.array([1.0, 2.0, 1.0])
    elif filt_size == 4:
        a = np.array([1.0, 3.0, 3.0, 1.0])
    elif filt_size == 5:
        a = np.array([1.0, 4.0, 6.0, 4.0, 1.0])
    elif filt_size == 6:
        a = np.array([1.0, 5.0, 10.0, 10.0, 5.0, 1.0])
    elif filt_size == 7:
        a = np.array([1.0, 6.0, 15.0, 20.0, 15.0, 6.0, 1.0])
    else:
        raise ValueError(filt_size)
    return a


# ------------------------------------------------------------------
# Host-side construction of the separable polyphase operators A, B.
# With c = a * stride / sum(a) = [0.25, 0.75, 0.75, 0.25]:
#   y[2t+0] = c3 * x[clamp(t-1)] + c1 * x[t]
#   y[2t+1] = c2 * x[t]          + c0 * x[clamp(t+1)]
# applied separably over rows and columns (clamp = replication pad).
# ------------------------------------------------------------------
def _build_operators(H, W, filt_size, stride):
    a = get_filter_1d(filt_size)
    c = a * stride / a.sum()
    c0, c1, c2, c3 = (float(v) for v in c)

    A = np.zeros((2 * H, H), np.float32)          # y_rows = A @ x
    for t in range(H):
        A[2 * t, max(t - 1, 0)] += c3
        A[2 * t, t] += c1
        A[2 * t + 1, t] += c2
        A[2 * t + 1, min(t + 1, H - 1)] += c0

    B = np.zeros((W, 2 * W), np.float32)          # y = y_rows @ B
    for u in range(W):
        B[max(u - 1, 0), 2 * u] += c3
        B[u, 2 * u] += c1
        B[u, 2 * u + 1] += c2
        B[min(u + 1, W - 1), 2 * u + 1] += c0
    return A, B


# ------------------------------------------------------------------
# Hardware queries (best-effort, with conservative fallbacks)
# ------------------------------------------------------------------
def _tpu_vmem_capacity_bytes(default=64 * 1024 * 1024):
    try:
        info = pltpu.get_tpu_info()
        cap = getattr(info, "vmem_capacity_bytes", None)
        if cap:
            return int(cap)
    except Exception:
        pass
    return default


def _num_tensorcores():
    try:
        info = pltpu.get_tpu_info()
        for attr in ("num_tensorcores", "tensorcores_per_chip",
                     "num_cores", "core_count"):
            v = getattr(info, attr, None)
            if isinstance(v, int) and v > 0:
                return v
    except Exception:
        pass
    return 1


def _pick_block_planes(nc, h, w, itemsize, vmem_limit, num_cores):
    """Planes per grid step, and how many dummy planes to pad NC with."""
    # Per plane: double-buffered in (H*W) + out (2H*2W) pipeline blocks, f32 /
    # bf16 matmul temporaries (split halves, cols, y), and this plane's slice
    # of the broadcast row operator (bf16).
    per_plane = (5 * h * w) * itemsize * 2 + 40 * h * w + 4 * h * h
    # Operators A (2H,H) + B (W,2W) in bf16 (double-buffered) + slack.
    fixed = 8 * (h * h + w * w) + (2 << 20)
    budget = max(vmem_limit - fixed, per_plane)
    cap = int(max(1, min(nc, 256, budget // per_plane)))
    if num_cores > 1 and nc >= num_cores:
        # Keep at least one grid step per TensorCore (v7x megacore); on
        # single-core chips (v5e/v6e) do NOT shrink the block for this.
        cap = min(cap, max(1, -(-nc // num_cores)))
    # Prefer an exact divisor of nc near the cap (no padding) ...
    for t in range(cap, 0, -1):
        if nc % t == 0:
            if 2 * t > cap:
                return t, 0
            break
    # ... otherwise keep the large block and pad NC up to a multiple of it.
    return cap, (-nc) % cap


# ------------------------------------------------------------------
# Pallas kernel: y[p] = A @ x[p] @ B for tc planes per grid step, with both
# passes expressed as single (batched) MXU matmuls, bf16 operands, f32 accum.
# ------------------------------------------------------------------
def _split_bf16(v):
    """Represent v as a short sum of bf16 parts: exact for bf16 inputs,
    ~2^-18 relative error for f32.  Lets every matmul run as a single native
    bf16 MXU pass with f32 accumulation (no multi-pass f32 emulation)."""
    if v.dtype == jnp.bfloat16:
        return (v,)
    v = v.astype(jnp.float32)
    hi = v.astype(jnp.bfloat16)
    lo = (v - hi.astype(jnp.float32)).astype(jnp.bfloat16)
    return (hi, lo)


def _upsample_kernel(x_ref, a_ref, b_ref, o_ref):
    tc, H, W = x_ref.shape
    f32 = jnp.float32
    A = a_ref[...]                                    # (2H, H)  bf16 (exact coeffs)
    B = b_ref[...]                                    # (W, 2W)  bf16
    x = x_ref[...]                                    # (tc, H, W)

    # ---- column pass: x @ B -------------------------------------------------
    if H % 8 == 0:
        # One large-M 2D matmul: (tc*H, W) @ (W, 2W).  Merging the leading
        # dims is a free relayout when H is a sublane multiple.
        parts = _split_bf16(x.reshape(tc * H, W))
        cols = jnp.dot(parts[0], B, preferred_element_type=f32)
        for p in parts[1:]:
            cols = cols + jnp.dot(p, B, preferred_element_type=f32)
        cols = cols.reshape(tc, H, 2 * W)
    else:
        # Batched fallback (no reshape needed): (tc, H, W) x (tc, W, 2W).
        Bb = jnp.broadcast_to(B, (tc, W, 2 * W))
        dn = (((2,), (1,)), ((0,), (0,)))
        parts = _split_bf16(x)
        cols = lax.dot_general(parts[0], Bb, dn, preferred_element_type=f32)
        for p in parts[1:]:
            cols = cols + lax.dot_general(p, Bb, dn, preferred_element_type=f32)

    # ---- row pass: A @ cols, batched over planes ----------------------------
    # (tc, 2H, H) x (tc, H, 2W) -> (tc, 2H, 2W); no per-plane Python loop.
    Ab = jnp.broadcast_to(A, (tc, 2 * H, H))
    dn = (((2,), (1,)), ((0,), (0,)))
    parts = _split_bf16(cols)
    y = lax.dot_general(Ab, parts[0], dn, preferred_element_type=f32)
    for p in parts[1:]:
        y = y + lax.dot_general(Ab, p, dn, preferred_element_type=f32)

    o_ref[...] = y.astype(o_ref.dtype)


# ------------------------------------------------------------------
# Wrapper
# ------------------------------------------------------------------
def upsample_pallas(x, channels, pad_type='repl', filt_size=4, stride=2):
    assert pad_type in ('repl', 'replicate'), "kernel specialized to default pad"
    assert filt_size == 4 and stride == 2, "kernel specialized to module defaults"
    N, C, H, W = x.shape
    assert C == channels
    NC = N * C

    A_np, B_np = _build_operators(H, W, filt_size, stride)
    # Filter coefficients are 0.25 / 0.75: exact in bf16 -> native single-pass
    # bf16 MXU matmuls with f32 accumulation and half the operator footprint.
    A = jnp.asarray(A_np).astype(jnp.bfloat16)
    B = jnp.asarray(B_np).astype(jnp.bfloat16)

    # Generation-aware VMEM budget:
    #   64 MiB parts (v7x)      -> request ~51 MiB
    #   128 MiB parts (v5e/v6e) -> request ~102 MiB
    vmem_cap = _tpu_vmem_capacity_bytes()
    vmem_limit = max(32 * 1024 * 1024,
                     min(int(vmem_cap * 0.8), vmem_cap - (8 << 20)))
    tc, pad = _pick_block_planes(NC, H, W, x.dtype.itemsize, vmem_limit,
                                 _num_tensorcores())

    xr = x.reshape(NC, H, W)                          # metadata-only reshape
    if pad:                                           # avoid tc collapsing to 1
        xr = jnp.pad(xr, ((0, pad), (0, 0), (0, 0)))
    NCp = NC + pad

    y = pl.pallas_call(
        _upsample_kernel,
        out_shape=jax.ShapeDtypeStruct((NCp, 2 * H, 2 * W), x.dtype),
        grid=(NCp // tc,),
        in_specs=[
            pl.BlockSpec((tc, H, W), lambda i: (i, 0, 0)),      # raw planes
            pl.BlockSpec((2 * H, H), lambda i: (0, 0)),         # row operator A
            pl.BlockSpec((W, 2 * W), lambda i: (0, 0)),         # col operator B
        ],
        out_specs=pl.BlockSpec((tc, 2 * H, 2 * W), lambda i: (i, 0, 0)),
        compiler_params=pltpu.CompilerParams(
            dimension_semantics=("parallel",),
            vmem_limit_bytes=vmem_limit,
        ),
    )(xr, A, B)

    if pad:
        y = y[:NC]
    return y.reshape(N, C, 2 * H, 2 * W)              # metadata-only reshape


# ------------------------------------------------------------------
# Pure-JAX reference reproducing the PyTorch forward exactly
# ------------------------------------------------------------------
def upsample_ref(x, channels, filt_size=4, stride=2):
    N, C, H, W = x.shape
    a = get_filter_1d(filt_size)
    filt2d = np.outer(a, a)
    filt2d = filt2d / filt2d.sum() * stride ** 2
    w = jnp.asarray(np.tile(filt2d[None, None], (C, 1, 1, 1)), x.dtype)  # (C,1,k,k)

    pad_size = (filt_size - 1) // 2
    p = 1 + pad_size                      # conv_transpose2d padding arg
    xp = jnp.pad(x, ((0, 0), (0, 0), (1, 1), (1, 1)), mode='edge')

    # conv_transpose2d(x, w, stride=s, padding=p) ==
    #   conv_general_dilated(x, flip(w), lhs_dilation=s, padding=k-1-p)
    wf = jnp.flip(w, axis=(2, 3))
    q = filt_size - 1 - p
    y = lax.conv_general_dilated(
        xp, wf,
        window_strides=(1, 1),
        padding=[(q, q), (q, q)],
        lhs_dilation=(stride, stride),
        dimension_numbers=('NCHW', 'OIHW', 'NCHW'),
        feature_group_count=C,
        precision=lax.Precision.HIGHEST)
    y = y[:, :, 1:, 1:]
    if filt_size % 2 == 0:                # filt_odd == False -> extra crop
        y = y[:, :, :-1, :-1]
    return y


if __name__ == "__main__":
    N, C, H, W = 2, 4, 16, 16
    key = jax.random.PRNGKey(0)
    x = jax.random.normal(key, (N, C, H, W), dtype=jnp.float32)

    y = jax.block_until_ready(upsample_pallas(x, channels=C))
    assert y.shape == (N, C, 2 * H, 2 * W), y.shape
    assert y.dtype == x.dtype

    y_ref = jax.block_until_ready(upsample_ref(x, channels=C))
    np.testing.assert_allclose(np.asarray(y), np.asarray(y_ref),
                               rtol=1e-4, atol=1e-4)

    print("KERNEL_OK")
</pallas_src>

<mosaic_0001>
module attributes {stable_mosaic.version = 11 : i64} {
  func.func @_upsample_kernel(%arg0: i32, %arg1: memref<8x16x16xf32, #tpu.memory_space<vmem>>, %arg2: memref<32x16xbf16, #tpu.memory_space<vmem>>, %arg3: memref<16x32xbf16, #tpu.memory_space<vmem>>, %arg4: memref<8x32x32xf32, #tpu.memory_space<vmem>>) attributes {dimension_semantics = [#tpu.dimension_semantics<parallel>], iteration_bounds = array<i64: 1>, scalar_prefetch = 0 : i64, scratch_operands = 0 : i64, tpu.core_type = #tpu.core_type<tc>, window_params = [{transform_indices = @transform_0, window_bounds = array<i64: 8, 16, 16>}, {pipeline_mode = #tpu.pipeline_mode<synchronous>, transform_indices = @transform_1, window_bounds = array<i64: 32, 16>}, {pipeline_mode = #tpu.pipeline_mode<synchronous>, transform_indices = @transform_2, window_bounds = array<i64: 16, 32>}, {transform_indices = @transform_3, window_bounds = array<i64: 8, 32, 32>}]} {
    %c0 = arith.constant 0 : index
    %c0_0 = arith.constant 0 : index
    %0 = vector.load %arg2[%c0, %c0_0] : memref<32x16xbf16, #tpu.memory_space<vmem>>, vector<32x16xbf16>
    %c0_1 = arith.constant 0 : index
    %c0_2 = arith.constant 0 : index
    %1 = vector.load %arg3[%c0_1, %c0_2] : memref<16x32xbf16, #tpu.memory_space<vmem>>, vector<16x32xbf16>
    %c0_3 = arith.constant 0 : index
    %c0_4 = arith.constant 0 : index
    %c0_5 = arith.constant 0 : index
    %2 = vector.load %arg1[%c0_3, %c0_4, %c0_5] : memref<8x16x16xf32, #tpu.memory_space<vmem>>, vector<8x16x16xf32>
    %3 = vector.shape_cast %2 : vector<8x16x16xf32> to vector<128x16xf32>
    %4 = arith.truncf %3 : vector<128x16xf32> to vector<128x16xbf16>
    %5 = arith.extf %4 : vector<128x16xbf16> to vector<128x16xf32>
    %6 = arith.subf %3, %5 : vector<128x16xf32>
    %7 = arith.truncf %6 : vector<128x16xf32> to vector<128x16xbf16>
    %cst = arith.constant dense<0.000000e+00> : vector<128x32xf32>
    %8 = tpu.matmul %4, %1, %cst {dimension_numbers = #tpu.dot_dimension_numbers<[1], [0], [0], [1], [0, 0, 1, 1], [], []>} : vector<128x16xbf16>, vector<16x32xbf16>, vector<128x32xf32> -> vector<128x32xf32>
    %cst_6 = arith.constant dense<0.000000e+00> : vector<128x32xf32>
    %9 = tpu.matmul %7, %1, %cst_6 {dimension_numbers = #tpu.dot_dimension_numbers<[1], [0], [0], [1], [0, 0, 1, 1], [], []>} : vector<128x16xbf16>, vector<16x32xbf16>, vector<128x32xf32> -> vector<128x32xf32>
    %10 = arith.addf %8, %9 : vector<128x32xf32>
    %11 = vector.shape_cast %10 : vector<128x32xf32> to vector<8x16x32xf32>
    %12 = vector.shape_cast %0 : vector<32x16xbf16> to vector<1x32x16xbf16>
    %13 = vector.broadcast %12 : vector<1x32x16xbf16> to vector<8x32x16xbf16>
    %14 = arith.truncf %11 : vector<8x16x32xf32> to vector<8x16x32xbf16>
    %15 = arith.extf %14 : vector<8x16x32xbf16> to vector<8x16x32xf32>
    %16 = arith.subf %11, %15 : vector<8x16x32xf32>
    %17 = arith.truncf %16 : vector<8x16x32xf32> to vector<8x16x32xbf16>
    %cst_7 = arith.constant dense<0.000000e+00> : vector<8x32x32xf32>
    %18 = tpu.matmul %13, %14, %cst_7 {dimension_numbers = #tpu.dot_dimension_numbers<[2], [1], [1], [2], [0, 0, 0, 1, 1, 2], [0], [0]>} : vector<8x32x16xbf16>, vector<8x16x32xbf16>, vector<8x32x32xf32> -> vector<8x32x32xf32>
    %cst_8 = arith.constant dense<0.000000e+00> : vector<8x32x32xf32>
    %19 = tpu.matmul %13, %17, %cst_8 {dimension_numbers = #tpu.dot_dimension_numbers<[2], [1], [1], [2], [0, 0, 0, 1, 1, 2], [0], [0]>} : vector<8x32x16xbf16>, vector<8x16x32xbf16>, vector<8x32x32xf32> -> vector<8x32x32xf32>
    %20 = arith.addf %18, %19 : vector<8x32x32xf32>
    %c0_9 = arith.constant 0 : index
    %c0_10 = arith.constant 0 : index
    %c0_11 = arith.constant 0 : index
    %21 = vector.load %arg4[%c0_9, %c0_10, %c0_11] : memref<8x32x32xf32, #tpu.memory_space<vmem>>, vector<8x32x32xf32>
    tpu.vector_store %arg4[%c0_9, %c0_10, %c0_11], %20 {strides = array<i32>} : memref<8x32x32xf32, #tpu.memory_space<vmem>>, vector<8x32x32xf32>,
    return
  }
  func.func @transform_0(%arg0: i32) -> (i32, i32, i32) {
    %c0_i32 = arith.constant 0 : i32
    %c0_i32_0 = arith.constant 0 : i32
    %c0_i32_1 = arith.constant 0 : i32
    return %arg0, %c0_i32, %c0_i32_0 : i32, i32, i32
  }
  func.func @transform_1(%arg0: i32) -> (i32, i32) {
    %c0_i32 = arith.constant 0 : i32
    %c0_i32_0 = arith.constant 0 : i32
    %c0_i32_1 = arith.constant 0 : i32
    return %c0_i32, %c0_i32_0 : i32, i32
  }
  func.func @transform_2(%arg0: i32) -> (i32, i32) {
    %c0_i32 = arith.constant 0 : i32
    %c0_i32_0 = arith.constant 0 : i32
    %c0_i32_1 = arith.constant 0 : i32
    return %c0_i32, %c0_i32_0 : i32, i32
  }
  func.func @transform_3(%arg0: i32) -> (i32, i32, i32) {
    %c0_i32 = arith.constant 0 : i32
    %c0_i32_0 = arith.constant 0 : i32
    %c0_i32_1 = arith.constant 0 : i32
    return %arg0, %c0_i32, %c0_i32_0 : i32, i32, i32
  }
}

</mosaic_0001>

<llo_original>
// kernel: tpu_custom_call.1
$region0: #{tpu_custom_call.1}
  #allocation0 [shape = 'u32[]', space=smem, size = 0x4, offset = 0x4, fixed_abs, tag = 'smem constant byte address 0x4 - core index']
  #allocation1 [shape = 'u32[144,128]{1,0:T(1,128)}', space=vmem, size = 0x12000, scoped, tag = 'internal scratch']
  %s0 = inlined_call_operand.hbm [shape: f32[8,16,16], index: 0, kind: input, shape index: {}]
  %s1 = inlined_call_operand.vmem [shape: bf16[32,16], index: 1, kind: input, shape index: {}]
  %s2 = inlined_call_operand.vmem [shape: bf16[16,32], index: 2, kind: input, shape index: {}]
  %s3 = inlined_call_operand.hbm [shape: f32[8,32,32], index: 3, kind: output, shape index: {}]
  %s4 = sld [smem:[#allocation0]]
  $region26: #{tpu_custom_call.1} parent=0
    _
  %s6 = ssub.s32 1, %s4
  %s7 = scalar_select 0, %s6, %s4
  $region1: #{tpu_custom_call.1} parent=0
    #allocation2 [shape = 'u8[65536]{0}', space=vmem, size = 0x10000, scoped, tag = 'input window, operand 0, single buffered']
    #allocation3 [shape = 's32[1]{0}', space=sflag, size = 0x4, scoped, tag = 'scoped memory for tpu_custom_call.1']
    #allocation4 [shape = 's32[1]{0}', space=sflag, size = 0x4, scoped, tag = 'scoped memory for tpu_custom_call.1']
    #allocation5 [shape = 'u8[131072]{0}', space=vmem, size = 0x20000, scoped, tag = 'output window, operand 0, single buffered']
    %8 = vsyncpa [#allocation3], 0
    %9 = vsyncpa [#allocation4], 0
    // Predicated region
    $region2: #{tpu_custom_call.1} parent=1 // pred_check
      _
    $region3: #{tpu_custom_call.1} parent=1 // pred_check_branch
      %11 = sbr.rel (0) target = $region5
    $region4: #{tpu_custom_call.1} parent=1 // pred_region
      %s13 = ssub.s32 2048, 2048
      %14 = vsyncadd [#allocation3], %s13
      %s15 = sshll.u32 [#allocation2], 4
      %s16 = int_to_ptr.vmem [resolvable:$true] %s15
      %21 = dma.hbm_to_vmem [thread:$0]  %s0, 2048, %s16, [#allocation3], 128, 128, 8
    $region5: #{tpu_custom_call.1} parent=1 // pred_fallthru
      _
    // Predicated region
    $region6: #{tpu_custom_call.1} parent=1 // pred_check
      _
    $region7: #{tpu_custom_call.1} parent=1 // pred_check_branch
      %23 = sbr.rel (0) target = $region9
    $region8: #{tpu_custom_call.1} parent=1 // pred_region
      _
    $region9: #{tpu_custom_call.1} parent=1 // pred_fallthru
      _
    // Predicated region
    $region10: #{tpu_custom_call.1} parent=1 // pred_check
      _
    $region11: #{tpu_custom_call.1} parent=1 // pred_check_branch
      %25 = sbr.rel (0) target = $region13
    $region12: #{tpu_custom_call.1} parent=1 // pred_region
      _
    $region13: #{tpu_custom_call.1} parent=1 // pred_fallthru
      _
    // Predicated region
    $region14: #{tpu_custom_call.1} parent=1 // pred_check
      _
    $region15: #{tpu_custom_call.1} parent=1 // pred_check_branch
      %27 = sbr.rel (0) target = $region17
    $region16: #{tpu_custom_call.1} parent=1 // pred_region
      %28 = dma.done [#allocation3], 2048
    $region17: #{tpu_custom_call.1} parent=1 // pred_fallthru
      _
    %v30 = vld [vmem:[%s1] sm:$0xf]
    %v31 = vld [vmem:[%s1 + $0x4] sm:$0xf]
    %v32 = vld [vmem:[%s1 + $0x8] sm:$0xf]
    %v33 = vld [vmem:[%s1 + $0xc] sm:$0xf]
    %v34 = vld [vmem:[%s2] sm:$0xf]
    %v35 = vld [vmem:[%s2 + $0x4] sm:$0xf]
    %v36 = vld [vmem:[#allocation2] sm:$0xff]
    %v37 = vld [vmem:[#allocation2 + $0x8] sm:$0xff]
    %v38 = vld [vmem:[#allocation2 + $0x10] sm:$0xff]
    %v39 = vld [vmem:[#allocation2 + $0x18] sm:$0xff]
    %v40 = vld [vmem:[#allocation2 + $0x20] sm:$0xff]
    %v41 = vld [vmem:[#allocation2 + $0x28] sm:$0xff]
    %v42 = vld [vmem:[#allocation2 + $0x30] sm:$0xff]
    %v43 = vld [vmem:[#allocation2 + $0x38] sm:$0xff]
    %v44 = vld [vmem:[#allocation2 + $0x40] sm:$0xff]
    %v45 = vld [vmem:[#allocation2 + $0x48] sm:$0xff]
    %v46 = vld [vmem:[#allocation2 + $0x50] sm:$0xff]
    %v47 = vld [vmem:[#allocation2 + $0x58] sm:$0xff]
    %v48 = vld [vmem:[#allocation2 + $0x60] sm:$0xff]
    %v49 = vld [vmem:[#allocation2 + $0x68] sm:$0xff]
    %v50 = vld [vmem:[#allocation2 + $0x70] sm:$0xff]
    %v51 = vld [vmem:[#allocation2 + $0x78] sm:$0xff]
    %v52 = vpack.c.bf16 %v37, %v36
    %v53 = vpack.c.bf16 %v39, %v38
    %v54 = vpack.c.bf16 %v41, %v40
    %v55 = vpack.c.bf16 %v43, %v42
    %v56 = vpack.c.bf16 %v45, %v44
    %v57 = vpack.c.bf16 %v47, %v46
    %v58 = vpack.c.bf16 %v49, %v48
    %v59 = vpack.c.bf16 %v51, %v50
    %v60 = vunpack.c.l.bf16 %v52
    %v61 = vunpack.c.h.bf16 %v52
    %v62 = vunpack.c.l.bf16 %v53
    %v63 = vunpack.c.h.bf16 %v53
    %v64 = vunpack.c.l.bf16 %v54
    %v65 = vunpack.c.h.bf16 %v54
    %v66 = vunpack.c.l.bf16 %v55
    %v67 = vunpack.c.h.bf16 %v55
    %v68 = vunpack.c.l.bf16 %v56
    %v69 = vunpack.c.h.bf16 %v56
    %v70 = vunpack.c.l.bf16 %v57
    %v71 = vunpack.c.h.bf16 %v57
    %v72 = vunpack.c.l.bf16 %v58
    %v73 = vunpack.c.h.bf16 %v58
    %v74 = vunpack.c.l.bf16 %v59
    %v75 = vunpack.c.h.bf16 %v59
    %v76 = vsub.f32 %v36, %v60
    %v77 = vsub.f32 %v37, %v61
    %v78 = vsub.f32 %v38, %v62
    %v79 = vsub.f32 %v39, %v63
    %v80 = vsub.f32 %v40, %v64
    %v81 = vsub.f32 %v41, %v65
    %v82 = vsub.f32 %v42, %v66
    %v83 = vsub.f32 %v43, %v67
    %v84 = vsub.f32 %v44, %v68
    %v85 = vsub.f32 %v45, %v69
    %v86 = vsub.f32 %v46, %v70
    %v87 = vsub.f32 %v47, %v71
    %v88 = vsub.f32 %v48, %v72
    %v89 = vsub.f32 %v49, %v73
    %v90 = vsub.f32 %v50, %v74
    %v91 = vsub.f32 %v51, %v75
    %v92 = vpack.c.bf16 %v77, %v76
    %v93 = vpack.c.bf16 %v79, %v78
    %v94 = vpack.c.bf16 %v81, %v80
    %v95 = vpack.c.bf16 %v83, %v82
    %v96 = vpack.c.bf16 %v85, %v84
    %v97 = vpack.c.bf16 %v87, %v86
    %v98 = vpack.c.bf16 %v89, %v88
    %v99 = vpack.c.bf16 %v91, %v90
    %v102 = vunpack.c.l.b16 %v34
    %v103 = vunpack.c.l.b16 %v35
    %v104 = vpack.c.b16 %v103, %v102
    %vm106 = vcmask 130048
    %v108 = vsel %vm106, %v92, 0
    %v111 = vsel %vm106, %v93, 0
    %v114 = vsel %vm106, %v94, 0
    %v117 = vsel %vm106, %v95, 0
    %v120 = vsel %vm106, %v96, 0
    %v123 = vsel %vm106, %v97, 0
    %v126 = vsel %vm106, %v98, 0
    %v129 = vsel %vm106, %v99, 0
    %131 = vmatprep.subr.bf16.mxu0 0
    %132 = vmatpush1.bf16.msra.mxu0 %v104
    %133 = vmatprep.subr.bf16.mxu0 0
    %134 = vmatpush1.bf16.msra.mxu0 0
    %135 = vmatprep.subr.bf16.mxu0 0
    %136 = vmatpush1.bf16.msra.mxu0 0
    %137 = vmatprep.subr.bf16.mxu0 0
    %138 = vmatpush1.bf16.msra.mxu0 0
    %139 = vmatprep.subr.bf16.mxu0 0
    %140 = vmatpush1.bf16.msra.mxu0 0
    %141 = vmatprep.subr.bf16.mxu0 0
    %142 = vmatpush1.bf16.msra.mxu0 0
    %143 = vmatprep.subr.bf16.mxu0 0
    %144 = vmatpush1.bf16.msra.mxu0 0
    %145 = vmatprep.subr.bf16.mxu0 0
    %146 = vmatpush1.bf16.msra.mxu0 0
    %147 = vmatprep.subr.bf16.mxu0 0
    %148 = vmatpush1.bf16.msra.mxu0 0
    %149 = vmatprep.subr.bf16.mxu0 0
    %150 = vmatpush1.bf16.msra.mxu0 0
    %151 = vmatprep.subr.bf16.mxu0 0
    %152 = vmatpush1.bf16.msra.mxu0 0
    %153 = vmatprep.subr.bf16.mxu0 0
    %154 = vmatpush1.bf16.msra.mxu0 0
    %155 = vmatprep.subr.bf16.mxu0 0
    %156 = vmatpush1.bf16.msra.mxu0 0
    %157 = vmatprep.subr.bf16.mxu0 0
    %158 = vmatpush1.bf16.msra.mxu0 0
    %159 = vmatprep.subr.bf16.mxu0 0
    %160 = vmatpush1.bf16.msra.mxu0 0
    %161 = vmatprep.subr.bf16.mxu0 0
    %162 = vmatpush1.bf16.msra.mxu0 0
    %163 = vmatprep.mubr.bf16.mxu0 0
    %164 = vmatmul.mubr.bf16.gmra.mrb[0].mxu0 %v108
    %v165 = vpop.f32.mrb[0].mxu0
    %v166 = vadd.f32 0.0, %v165
    %v167 = vpop.f32.mrb[0].mxu0
    %v168 = vpop.f32.mrb[0].mxu0
    %v169 = vadd.f32 0.0, %v168
    %v170 = vpop.f32.mrb[0].mxu0
    %171 = vmatprep.mubr.bf16.mxu0 0
    %172 = vmatmul.mubr.bf16.gmra.mrb[0].mxu0 %v111
    %v173 = vpop.f32.mrb[0].mxu0
    %v174 = vadd.f32 0.0, %v173
    %v175 = vpop.f32.mrb[0].mxu0
    %v176 = vpop.f32.mrb[0].mxu0
    %v177 = vadd.f32 0.0, %v176
    %v178 = vpop.f32.mrb[0].mxu0
    %179 = vmatprep.mubr.bf16.mxu0 0
    %180 = vmatmul.mubr.bf16.gmra.mrb[0].mxu0 %v114
    %v181 = vpop.f32.mrb[0].mxu0
    %v182 = vadd.f32 0.0, %v181
    %v183 = vpop.f32.mrb[0].mxu0
    %v184 = vpop.f32.mrb[0].mxu0
    %v185 = vadd.f32 0.0, %v184
    %v186 = vpop.f32.mrb[0].mxu0
    %187 = vmatprep.mubr.bf16.mxu0 0
    %188 = vmatmul.mubr.bf16.gmra.mrb[0].mxu0 %v117
    %v189 = vpop.f32.mrb[0].mxu0
    %v190 = vadd.f32 0.0, %v189
    %v191 = vpop.f32.mrb[0].mxu0
    %v192 = vpop.f32.mrb[0].mxu0
    %v193 = vadd.f32 0.0, %v192
    %v194 = vpop.f32.mrb[0].mxu0
    %195 = vmatprep.mubr.bf16.mxu0 0
    %196 = vmatmul.mubr.bf16.gmra.mrb[0].mxu0 %v120
    %v197 = vpop.f32.mrb[0].mxu0
    %v198 = vadd.f32 0.0, %v197
    %v199 = vpop.f32.mrb[0].mxu0
    %v200 = vpop.f32.mrb[0].mxu0
    %v201 = vadd.f32 0.0, %v200
    %v202 = vpop.f32.mrb[0].mxu0
    %203 = vmatprep.mubr.bf16.mxu0 0
    %204 = vmatmul.mubr.bf16.gmra.mrb[0].mxu0 %v123
    %v205 = vpop.f32.mrb[0].mxu0
    %v206 = vadd.f32 0.0, %v205
    %v207 = vpop.f32.mrb[0].mxu0
    %v208 = vpop.f32.mrb[0].mxu0
    %v209 = vadd.f32 0.0, %v208
    %v210 = vpop.f32.mrb[0].mxu0
    %211 = vmatprep.mubr.bf16.mxu0 0
    %212 = vmatmul.mubr.bf16.gmra.mrb[0].mxu0 %v126
    %v213 = vpop.f32.mrb[0].mxu0
    %v214 = vadd.f32 0.0, %v213
    %v215 = vpop.f32.mrb[0].mxu0
    %v216 = vpop.f32.mrb[0].mxu0
    %v217 = vadd.f32 0.0, %v216
    %v218 = vpop.f32.mrb[0].mxu0
    %219 = vmatprep.mubr.bf16.mxu0 0
    %220 = vmatmul.mubr.bf16.gmra.mrb[0].mxu0 %v129
    %v221 = vpop.f32.mrb[0].mxu0
    %v222 = vadd.f32 0.0, %v221
    %v223 = vpop.f32.mrb[0].mxu0
    %v224 = vpop.f32.mrb[0].mxu0
    %v225 = vadd.f32 0.0, %v224
    %v226 = vpop.f32.mrb[0].mxu0
    %227 = vdwg.mxu0
    %v229 = vsel %vm106, %v52, 0
    %v232 = vsel %vm106, %v53, 0
    %v235 = vsel %vm106, %v54, 0
    %v238 = vsel %vm106, %v55, 0
    %v241 = vsel %vm106, %v56, 0
    %v244 = vsel %vm106, %v57, 0
    %v247 = vsel %vm106, %v58, 0
    %v250 = vsel %vm106, %v59, 0
    %252 = vmatprep.subr.bf16.mxu0 0
    %253 = vmatpush1.bf16.msra.mxu0 %v104
    %254 = vmatprep.subr.bf16.mxu0 0
    %255 = vmatpush1.bf16.msra.mxu0 0
    %256 = vmatprep.subr.bf16.mxu0 0
    %257 = vmatpush1.bf16.msra.mxu0 0
    %258 = vmatprep.subr.bf16.mxu0 0
    %259 = vmatpush1.bf16.msra.mxu0 0
    %260 = vmatprep.subr.bf16.mxu0 0
    %261 = vmatpush1.bf16.msra.mxu0 0
    %262 = vmatprep.subr.bf16.mxu0 0
    %263 = vmatpush1.bf16.msra.mxu0 0
    %264 = vmatprep.subr.bf16.mxu0 0
    %265 = vmatpush1.bf16.msra.mxu0 0
    %266 = vmatprep.subr.bf16.mxu0 0
    %267 = vmatpush1.bf16.msra.mxu0 0
    %268 = vmatprep.subr.bf16.mxu0 0
    %269 = vmatpush1.bf16.msra.mxu0 0
    %270 = vmatprep.subr.bf16.mxu0 0
    %271 = vmatpush1.bf16.msra.mxu0 0
    %272 = vmatprep.subr.bf16.mxu0 0
    %273 = vmatpush1.bf16.msra.mxu0 0
    %274 = vmatprep.subr.bf16.mxu0 0
    %275 = vmatpush1.bf16.msra.mxu0 0
    %276 = vmatprep.subr.bf16.mxu0 0
    %277 = vmatpush1.bf16.msra.mxu0 0
    %278 = vmatprep.subr.bf16.mxu0 0
    %279 = vmatpush1.bf16.msra.mxu0 0
    %280 = vmatprep.subr.bf16.mxu0 0
    %281 = vmatpush1.bf16.msra.mxu0 0
    %282 = vmatprep.subr.bf16.mxu0 0
    %283 = vmatpush1.bf16.msra.mxu0 0
    %284 = vmatprep.mubr.bf16.mxu0 0
    %285 = vmatmul.mubr.bf16.gmra.mrb[0].mxu0 %v229
    %v286 = vpop.f32.mrb[0].mxu0
    %v287 = vadd.f32 %v166, %v286
    %v288 = vpop.f32.mrb[0].mxu0
    %v289 = vpop.f32.mrb[0].mxu0
    %v290 = vadd.f32 %v169, %v289
    %v291 = vpop.f32.mrb[0].mxu0
    %292 = vmatprep.mubr.bf16.mxu0 0
    %293 = vmatmul.mubr.bf16.gmra.mrb[0].mxu0 %v232
    %v294 = vpop.f32.mrb[0].mxu0
    %v295 = vadd.f32 %v174, %v294
    %v296 = vpop.f32.mrb[0].mxu0
    %v297 = vpop.f32.mrb[0].mxu0
    %v298 = vadd.f32 %v177, %v297
    %v299 = vpop.f32.mrb[0].mxu0
    %300 = vmatprep.mubr.bf16.mxu0 0
    %301 = vmatmul.mubr.bf16.gmra.mrb[0].mxu0 %v235
    %v302 = vpop.f32.mrb[0].mxu0
    %v303 = vadd.f32 %v182, %v302
    %v304 = vpop.f32.mrb[0].mxu0
    %v305 = vpop.f32.mrb[0].mxu0
    %v306 = vadd.f32 %v185, %v305
    %v307 = vpop.f32.mrb[0].mxu0
    %308 = vmatprep.mubr.bf16.mxu0 0
    %309 = vmatmul.mubr.bf16.gmra.mrb[0].mxu0 %v238
    %v310 = vpop.f32.mrb[0].mxu0
    %v311 = vadd.f32 %v190, %v310
    %v312 = vpop.f32.mrb[0].mxu0
    %v313 = vpop.f32.mrb[0].mxu0
    %v314 = vadd.f32 %v193, %v313
    %v315 = vpop.f32.mrb[0].mxu0
    %316 = vmatprep.mubr.bf16.mxu0 0
    %317 = vmatmul.mubr.bf16.gmra.mrb[0].mxu0 %v241
    %v318 = vpop.f32.mrb[0].mxu0
    %v319 = vadd.f32 %v198, %v318
    %v320 = vpop.f32.mrb[0].mxu0
    %v321 = vpop.f32.mrb[0].mxu0
    %v322 = vadd.f32 %v201, %v321
    %v323 = vpop.f32.mrb[0].mxu0
    %324 = vmatprep.mubr.bf16.mxu0 0
    %325 = vmatmul.mubr.bf16.gmra.mrb[0].mxu0 %v244
    %v326 = vpop.f32.mrb[0].mxu0
    %v327 = vadd.f32 %v206, %v326
    %v328 = vpop.f32.mrb[0].mxu0
    %v329 = vpop.f32.mrb[0].mxu0
    %v330 = vadd.f32 %v209, %v329
    %v331 = vpop.f32.mrb[0].mxu0
    %332 = vmatprep.mubr.bf16.mxu0 0
    %333 = vmatmul.mubr.bf16.gmra.mrb[0].mxu0 %v247
    %v334 = vpop.f32.mrb[0].mxu0
    %v335 = vadd.f32 %v214, %v334
    %v336 = vpop.f32.mrb[0].mxu0
    %v337 = vpop.f32.mrb[0].mxu0
    %v338 = vadd.f32 %v217, %v337
    %v339 = vpop.f32.mrb[0].mxu0
    %340 = vmatprep.mubr.bf16.mxu0 0
    %341 = vmatmul.mubr.bf16.gmra.mrb[0].mxu0 %v250
    %v342 = vpop.f32.mrb[0].mxu0
    %v343 = vadd.f32 %v222, %v342
    %v344 = vpop.f32.mrb[0].mxu0
    %v345 = vpop.f32.mrb[0].mxu0
    %v346 = vadd.f32 %v225, %v345
    %v347 = vpop.f32.mrb[0].mxu0
    %348 = vdwg.mxu0
    %v349 = vpack.c.bf16 %v290, %v287
    %v350 = vpack.c.bf16 %v298, %v295
    %v351 = vpack.c.bf16 %v306, %v303
    %v352 = vpack.c.bf16 %v314, %v311
    %v353 = vpack.c.bf16 %v322, %v319
    %v354 = vpack.c.bf16 %v330, %v327
    %v355 = vpack.c.bf16 %v338, %v335
    %v356 = vpack.c.bf16 %v346, %v343
    %v357 = vunpack.c.l.bf16 %v349
    %v358 = vunpack.c.h.bf16 %v349
    %v359 = vunpack.c.l.bf16 %v350
    %v360 = vunpack.c.h.bf16 %v350
    %v361 = vunpack.c.l.bf16 %v351
    %v362 = vunpack.c.h.bf16 %v351
    %v363 = vunpack.c.l.bf16 %v352
    %v364 = vunpack.c.h.bf16 %v352
    %v365 = vunpack.c.l.bf16 %v353
    %v366 = vunpack.c.h.bf16 %v353
    %v367 = vunpack.c.l.bf16 %v354
    %v368 = vunpack.c.h.bf16 %v354
    %v369 = vunpack.c.l.bf16 %v355
    %v370 = vunpack.c.h.bf16 %v355
    %v371 = vunpack.c.l.bf16 %v356
    %v372 = vunpack.c.h.bf16 %v356
    %v373 = vsub.f32 %v287, %v357
    %v374 = vsub.f32 %v290, %v358
    %v375 = vsub.f32 %v295, %v359
    %v376 = vsub.f32 %v298, %v360
    %v377 = vsub.f32 %v303, %v361
    %v378 = vsub.f32 %v306, %v362
    %v379 = vsub.f32 %v311, %v363
    %v380 = vsub.f32 %v314, %v364
    %v381 = vsub.f32 %v319, %v365
    %v382 = vsub.f32 %v322, %v366
    %v383 = vsub.f32 %v327, %v367
    %v384 = vsub.f32 %v330, %v368
    %v385 = vsub.f32 %v335, %v369
    %v386 = vsub.f32 %v338, %v370
    %v387 = vsub.f32 %v343, %v371
    %v388 = vsub.f32 %v346, %v372
    %v389 = vpack.c.bf16 %v374, %v373
    %v390 = vpack.c.bf16 %v376, %v375
    %v391 = vpack.c.bf16 %v378, %v377
    %v392 = vpack.c.bf16 %v380, %v379
    %v393 = vpack.c.bf16 %v382, %v381
    %v394 = vpack.c.bf16 %v384, %v383
    %v395 = vpack.c.bf16 %v386, %v385
    %v396 = vpack.c.bf16 %v388, %v387
    %v401 = vunpack.c.l.b16 %v30
    %v402 = vunpack.c.l.b16 %v31
    %v403 = vunpack.c.l.b16 %v32
    %v404 = vunpack.c.l.b16 %v33
    %v405 = vpack.c.b16 %v402, %v401
    %v406 = vpack.c.b16 %v404, %v403
    %v408 = vsel %vm106, %v405, 0
    %v411 = vsel %vm106, %v406, 0
    %413 = vmatprep.subr.bf16.mxu0 0
    %414 = vmatpush1.bf16.msra.mxu0 %v389
    %415 = vmatprep.subr.bf16.mxu0 0
    %416 = vmatpush1.bf16.msra.mxu0 0
    %417 = vmatprep.subr.bf16.mxu0 0
    %418 = vmatpush1.bf16.msra.mxu0 0
    %419 = vmatprep.subr.bf16.mxu0 0
    %420 = vmatpush1.bf16.msra.mxu0 0
    %421 = vmatprep.subr.bf16.mxu0 0
    %422 = vmatpush1.bf16.msra.mxu0 0
    %423 = vmatprep.subr.bf16.mxu0 0
    %424 = vmatpush1.bf16.msra.mxu0 0
    %425 = vmatprep.subr.bf16.mxu0 0
    %426 = vmatpush1.bf16.msra.mxu0 0
    %427 = vmatprep.subr.bf16.mxu0 0
    %428 = vmatpush1.bf16.msra.mxu0 0
    %429 = vmatprep.subr.bf16.mxu0 0
    %430 = vmatpush1.bf16.msra.mxu0 0
    %431 = vmatprep.subr.bf16.mxu0 0
    %432 = vmatpush1.bf16.msra.mxu0 0
    %433 = vmatprep.subr.bf16.mxu0 0
    %434 = vmatpush1.bf16.msra.mxu0 0
    %435 = vmatprep.subr.bf16.mxu0 0
    %436 = vmatpush1.bf16.msra.mxu0 0
    %437 = vmatprep.subr.bf16.mxu0 0
    %438 = vmatpush1.bf16.msra.mxu0 0
    %439 = vmatprep.subr.bf16.mxu0 0
    %440 = vmatpush1.bf16.msra.mxu0 0
    %441 = vmatprep.subr.bf16.mxu0 0
    %442 = vmatpush1.bf16.msra.mxu0 0
    %443 = vmatprep.subr.bf16.mxu0 0
    %444 = vmatpush1.bf16.msra.mxu0 0
    %445 = vmatprep.mubr.bf16.mxu0 0
    %446 = vmatmul.mubr.bf16.gmra.mrb[0].mxu0 %v408
    %v447 = vpop.f32.mrb[0].mxu0
    %v448 = vadd.f32 0.0, %v447
    %v449 = vpop.f32.mrb[0].mxu0
    %v450 = vpop.f32.mrb[0].mxu0
    %v451 = vadd.f32 0.0, %v450
    %v452 = vpop.f32.mrb[0].mxu0
    %453 = vmatprep.mubr.bf16.mxu0 0
    %454 = vmatmul.mubr.bf16.gmra.mrb[0].mxu0 %v411
    %v455 = vpop.f32.mrb[0].mxu0
    %v456 = vadd.f32 0.0, %v455
    %v457 = vpop.f32.mrb[0].mxu0
    %v458 = vpop.f32.mrb[0].mxu0
    %v459 = vadd.f32 0.0, %v458
    %v460 = vpop.f32.mrb[0].mxu0
    %461 = vdwg.mxu0
    %462 = vmatprep.subr.bf16.mxu0 0
    %463 = vmatpush1.bf16.msra.mxu0 %v390
    %464 = vmatprep.subr.bf16.mxu0 0
    %465 = vmatpush1.bf16.msra.mxu0 0
    %466 = vmatprep.subr.bf16.mxu0 0
    %467 = vmatpush1.bf16.msra.mxu0 0
    %468 = vmatprep.subr.bf16.mxu0 0
    %469 = vmatpush1.bf16.msra.mxu0 0
    %470 = vmatprep.subr.bf16.mxu0 0
    %471 = vmatpush1.bf16.msra.mxu0 0
    %472 = vmatprep.subr.bf16.mxu0 0
    %473 = vmatpush1.bf16.msra.mxu0 0
    %474 = vmatprep.subr.bf16.mxu0 0
    %475 = vmatpush1.bf16.msra.mxu0 0
    %476 = vmatprep.subr.bf16.mxu0 0
    %477 = vmatpush1.bf16.msra.mxu0 0
    %478 = vmatprep.subr.bf16.mxu0 0
    %479 = vmatpush1.bf16.msra.mxu0 0
    %480 = vmatprep.subr.bf16.mxu0 0
    %481 = vmatpush1.bf16.msra.mxu0 0
    %482 = vmatprep.subr.bf16.mxu0 0
    %483 = vmatpush1.bf16.msra.mxu0 0
    %484 = vmatprep.subr.bf16.mxu0 0
    %485 = vmatpush1.bf16.msra.mxu0 0
    %486 = vmatprep.subr.bf16.mxu0 0
    %487 = vmatpush1.bf16.msra.mxu0 0
    %488 = vmatprep.subr.bf16.mxu0 0
    %489 = vmatpush1.bf16.msra.mxu0 0
    %490 = vmatprep.subr.bf16.mxu0 0
    %491 = vmatpush1.bf16.msra.mxu0 0
    %492 = vmatprep.subr.bf16.mxu0 0
    %493 = vmatpush1.bf16.msra.mxu0 0
    %494 = vmatprep.mubr.bf16.mxu0 0
    %495 = vmatmul.mubr.bf16.gmra.mrb[0].mxu0 %v408
    %v496 = vpop.f32.mrb[0].mxu0
    %v497 = vadd.f32 0.0, %v496
    %v498 = vpop.f32.mrb[0].mxu0
    %v499 = vpop.f32.mrb[0].mxu0
    %v500 = vadd.f32 0.0, %v499
    %v501 = vpop.f32.mrb[0].mxu0
    %502 = vmatprep.mubr.bf16.mxu0 0
    %503 = vmatmul.mubr.bf16.gmra.mrb[0].mxu0 %v411
    %v504 = vpop.f32.mrb[0].mxu0
    %v505 = vadd.f32 0.0, %v504
    %v506 = vpop.f32.mrb[0].mxu0
    %v507 = vpop.f32.mrb[0].mxu0
    %v508 = vadd.f32 0.0, %v507
    %v509 = vpop.f32.mrb[0].mxu0
    %510 = vdwg.mxu0
    %511 = vmatprep.subr.bf16.mxu0 0
    %512 = vmatpush1.bf16.msra.mxu0 %v391
    %513 = vmatprep.subr.bf16.mxu0 0
    %514 = vmatpush1.bf16.msra.mxu0 0
    %515 = vmatprep.subr.bf16.mxu0 0
    %516 = vmatpush1.bf16.msra.mxu0 0
    %517 = vmatprep.subr.bf16.mxu0 0
    %518 = vmatpush1.bf16.msra.mxu0 0
    %519 = vmatprep.subr.bf16.mxu0 0
    %520 = vmatpush1.bf16.msra.mxu0 0
    %521 = vmatprep.subr.bf16.mxu0 0
    %522 = vmatpush1.bf16.msra.mxu0 0
    %523 = vmatprep.subr.bf16.mxu0 0
    %524 = vmatpush1.bf16.msra.mxu0 0
    %525 = vmatprep.subr.bf16.mxu0 0
    %526 = vmatpush1.bf16.msra.mxu0 0
    %527 = vmatprep.subr.bf16.mxu0 0
    %528 = vmatpush1.bf16.msra.mxu0 0
    %529 = vmatprep.subr.bf16.mxu0 0
    %530 = vmatpush1.bf16.msra.mxu0 0
    %531 = vmatprep.subr.bf16.mxu0 0
    %532 = vmatpush1.bf16.msra.mxu0 0
    %533 = vmatprep.subr.bf16.mxu0 0
    %534 = vmatpush1.bf16.msra.mxu0 0
    %535 = vmatprep.subr.bf16.mxu0 0
    %536 = vmatpush1.bf16.msra.mxu0 0
    %537 = vmatprep.subr.bf16.mxu0 0
    %538 = vmatpush1.bf16.msra.mxu0 0
    %539 = vmatprep.subr.bf16.mxu0 0
    %540 = vmatpush1.bf16.msra.mxu0 0
    %541 = vmatprep.subr.bf16.mxu0 0
    %542 = vmatpush1.bf16.msra.mxu0 0
    %543 = vmatprep.mubr.bf16.mxu0 0
    %544 = vmatmul.mubr.bf16.gmra.mrb[0].mxu0 %v408
    %v545 = vpop.f32.mrb[0].mxu0
    %v546 = vadd.f32 0.0, %v545
    %v547 = vpop.f32.mrb[0].mxu0
    %v548 = vpop.f32.mrb[0].mxu0
    %v549 = vadd.f32 0.0, %v548
    %v550 = vpop.f32.mrb[0].mxu0
    %551 = vmatprep.mubr.bf16.mxu0 0
    %552 = vmatmul.mubr.bf16.gmra.mrb[0].mxu0 %v411
    %v553 = vpop.f32.mrb[0].mxu0
    %v554 = vadd.f32 0.0, %v553
    %v555 = vpop.f32.mrb[0].mxu0
    %v556 = vpop.f32.mrb[0].mxu0
    %v557 = vadd.f32 0.0, %v556
    %v558 = vpop.f32.mrb[0].mxu0
    %559 = vdwg.mxu0
    %560 = vmatprep.subr.bf16.mxu0 0
    %561 = vmatpush1.bf16.msra.mxu0 %v392
    %562 = vmatprep.subr.bf16.mxu0 0
    %563 = vmatpush1.bf16.msra.mxu0 0
    %564 = vmatprep.subr.bf16.mxu0 0
    %565 = vmatpush1.bf16.msra.mxu0 0
    %566 = vmatprep.subr.bf16.mxu0 0
    %567 = vmatpush1.bf16.msra.mxu0 0
    %568 = vmatprep.subr.bf16.mxu0 0
    %569 = vmatpush1.bf16.msra.mxu0 0
    %570 = vmatprep.subr.bf16.mxu0 0
    %571 = vmatpush1.bf16.msra.mxu0 0
    %572 = vmatprep.subr.bf16.mxu0 0
    %573 = vmatpush1.bf16.msra.mxu0 0
    %574 = vmatprep.subr.bf16.mxu0 0
    %575 = vmatpush1.bf16.msra.mxu0 0
    %576 = vmatprep.subr.bf16.mxu0 0
    %577 = vmatpush1.bf16.msra.mxu0 0
    %578 = vmatprep.subr.bf16.mxu0 0
    %579 = vmatpush1.bf16.msra.mxu0 0
    %580 = vmatprep.subr.bf16.mxu0 0
    %581 = vmatpush1.bf16.msra.mxu0 0
    %582 = vmatprep.subr.bf16.mxu0 0
    %583 = vmatpush1.bf16.msra.mxu0 0
    %584 = vmatprep.subr.bf16.mxu0 0
    %585 = vmatpush1.bf16.msra.mxu0 0
    %586 = vmatprep.subr.bf16.mxu0 0
    %587 = vmatpush1.bf16.msra.mxu0 0
    %588 = vmatprep.subr.bf16.mxu0 0
    %589 = vmatpush1.bf16.msra.mxu0 0
    %590 = vmatprep.subr.bf16.mxu0 0
    %591 = vmatpush1.bf16.msra.mxu0 0
    %592 = vmatprep.mubr.bf16.mxu0 0
    %593 = vmatmul.mubr.bf16.gmra.mrb[0].mxu0 %v408
    %v594 = vpop.f32.mrb[0].mxu0
    %v595 = vadd.f32 0.0, %v594
    %v596 = vpop.f32.mrb[0].mxu0
    %v597 = vpop.f32.mrb[0].mxu0
    %v598 = vadd.f32 0.0, %v597
    %v599 = vpop.f32.mrb[0].mxu0
    %600 = vmatprep.mubr.bf16.mxu0 0
    %601 = vmatmul.mubr.bf16.gmra.mrb[0].mxu0 %v411
    %v602 = vpop.f32.mrb[0].mxu0
    %v603 = vadd.f32 0.0, %v602
    %v604 = vpop.f32.mrb[0].mxu0
    %v605 = vpop.f32.mrb[0].mxu0
    %v606 = vadd.f32 0.0, %v605
    %v607 = vpop.f32.mrb[0].mxu0
    %608 = vdwg.mxu0
    %609 = vmatprep.subr.bf16.mxu0 0
    %610 = vmatpush1.bf16.msra.mxu0 %v393
    %611 = vmatprep.subr.bf16.mxu0 0
    %612 = vmatpush1.bf16.msra.mxu0 0
    %613 = vmatprep.subr.bf16.mxu0 0
    %614 = vmatpush1.bf16.msra.mxu0 0
    %615 = vmatprep.subr.bf16.mxu0 0
    %616 = vmatpush1.bf16.msra.mxu0 0
    %617 = vmatprep.subr.bf16.mxu0 0
    %618 = vmatpush1.bf16.msra.mxu0 0
    %619 = vmatprep.subr.bf16.mxu0 0
    %620 = vmatpush1.bf16.msra.mxu0 0
    %621 = vmatprep.subr.bf16.mxu0 0
    %622 = vmatpush1.bf16.msra.mxu0 0
    %623 = vmatprep.subr.bf16.mxu0 0
    %624 = vmatpush1.bf16.msra.mxu0 0
    %625 = vmatprep.subr.bf16.mxu0 0
    %626 = vmatpush1.bf16.msra.mxu0 0
    %627 = vmatprep.subr.bf16.mxu0 0
    %628 = vmatpush1.bf16.msra.mxu0 0
    %629 = vmatprep.subr.bf16.mxu0 0
    %630 = vmatpush1.bf16.msra.mxu0 0
    %631 = vmatprep.subr.bf16.mxu0 0
    %632 = vmatpush1.bf16.msra.mxu0 0
    %633 = vmatprep.subr.bf16.mxu0 0
    %634 = vmatpush1.bf16.msra.mxu0 0
    %635 = vmatprep.subr.bf16.mxu0 0
    %636 = vmatpush1.bf16.msra.mxu0 0
    %637 = vmatprep.subr.bf16.mxu0 0
    %638 = vmatpush1.bf16.msra.mxu0 0
    %639 = vmatprep.subr.bf16.mxu0 0
    %640 = vmatpush1.bf16.msra.mxu0 0
    %641 = vmatprep.mubr.bf16.mxu0 0
    %642 = vmatmul.mubr.bf16.gmra.mrb[0].mxu0 %v408
    %v643 = vpop.f32.mrb[0].mxu0
    %v644 = vadd.f32 0.0, %v643
    %v645 = vpop.f32.mrb[0].mxu0
    %v646 = vpop.f32.mrb[0].mxu0
    %v647 = vadd.f32 0.0, %v646
    %v648 = vpop.f32.mrb[0].mxu0
    %649 = vmatprep.mubr.bf16.mxu0 0
    %650 = vmatmul.mubr.bf16.gmra.mrb[0].mxu0 %v411
    %v651 = vpop.f32.mrb[0].mxu0
    %v652 = vadd.f32 0.0, %v651
    %v653 = vpop.f32.mrb[0].mxu0
    %v654 = vpop.f32.mrb[0].mxu0
    %v655 = vadd.f32 0.0, %v654
    %v656 = vpop.f32.mrb[0].mxu0
    %657 = vdwg.mxu0
    %658 = vmatprep.subr.bf16.mxu0 0
    %659 = vmatpush1.bf16.msra.mxu0 %v394
    %660 = vmatprep.subr.bf16.mxu0 0
    %661 = vmatpush1.bf16.msra.mxu0 0
    %662 = vmatprep.subr.bf16.mxu0 0
    %663 = vmatpush1.bf16.msra.mxu0 0
    %664 = vmatprep.subr.bf16.mxu0 0
    %665 = vmatpush1.bf16.msra.mxu0 0
    %666 = vmatprep.subr.bf16.mxu0 0
    %667 = vmatpush1.bf16.msra.mxu0 0
    %668 = vmatprep.subr.bf16.mxu0 0
    %669 = vmatpush1.bf16.msra.mxu0 0
    %670 = vmatprep.subr.bf16.mxu0 0
    %671 = vmatpush1.bf16.msra.mxu0 0
    %672 = vmatprep.subr.bf16.mxu0 0
    %673 = vmatpush1.bf16.msra.mxu0 0
    %674 = vmatprep.subr.bf16.mxu0 0
    %675 = vmatpush1.bf16.msra.mxu0 0
    %676 = vmatprep.subr.bf16.mxu0 0
    %677 = vmatpush1.bf16.msra.mxu0 0
    %678 = vmatprep.subr.bf16.mxu0 0
    %679 = vmatpush1.bf16.msra.mxu0 0
    %680 = vmatprep.subr.bf16.mxu0 0
    %681 = vmatpush1.bf16.msra.mxu0 0
    %682 = vmatprep.subr.bf16.mxu0 0
    %683 = vmatpush1.bf16.msra.mxu0 0
    %684 = vmatprep.subr.bf16.mxu0 0
    %685 = vmatpush1.bf16.msra.mxu0 0
    %686 = vmatprep.subr.bf16.mxu0 0
    %687 = vmatpush1.bf16.msra.mxu0 0
    %688 = vmatprep.subr.bf16.mxu0 0
    %689 = vmatpush1.bf16.msra.mxu0 0
    %690 = vmatprep.mubr.bf16.mxu0 0
    %691 = vmatmul.mubr.bf16.gmra.mrb[0].mxu0 %v408
    %v692 = vpop.f32.mrb[0].mxu0
    %v693 = vadd.f32 0.0, %v692
    %v694 = vpop.f32.mrb[0].mxu0
    %v695 = vpop.f32.mrb[0].mxu0
    %v696 = vadd.f32 0.0, %v695
    %v697 = vpop.f32.mrb[0].mxu0
    %698 = vmatprep.mubr.bf16.mxu0 0
    %699 = vmatmul.mubr.bf16.gmra.mrb[0].mxu0 %v411
    %v700 = vpop.f32.mrb[0].mxu0
    %v701 = vadd.f32 0.0, %v700
    %v702 = vpop.f32.mrb[0].mxu0
    %v703 = vpop.f32.mrb[0].mxu0
    %v704 = vadd.f32 0.0, %v703
    %v705 = vpop.f32.mrb[0].mxu0
    %706 = vdwg.mxu0
    %707 = vmatprep.subr.bf16.mxu0 0
    %708 = vmatpush1.bf16.msra.mxu0 %v395
    %709 = vmatprep.subr.bf16.mxu0 0
    %710 = vmatpush1.bf16.msra.mxu0 0
    %711 = vmatprep.subr.bf16.mxu0 0
    %712 = vmatpush1.bf16.msra.mxu0 0
    %713 = vmatprep.subr.bf16.mxu0 0
    %714 = vmatpush1.bf16.msra.mxu0 0
    %715 = vmatprep.subr.bf16.mxu0 0
    %716 = vmatpush1.bf16.msra.mxu0 0
    %717 = vmatprep.subr.bf16.mxu0 0
    %718 = vmatpush1.bf16.msra.mxu0 0
    %719 = vmatprep.subr.bf16.mxu0 0
    %720 = vmatpush1.bf16.msra.mxu0 0
    %721 = vmatprep.subr.bf16.mxu0 0
    %722 = vmatpush1.bf16.msra.mxu0 0
    %723 = vmatprep.subr.bf16.mxu0 0
    %724 = vmatpush1.bf16.msra.mxu0 0
    %725 = vmatprep.subr.bf16.mxu0 0
    %726 = vmatpush1.bf16.msra.mxu0 0
    %727 = vmatprep.subr.bf16.mxu0 0
    %728 = vmatpush1.bf16.msra.mxu0 0
    %729 = vmatprep.subr.bf16.mxu0 0
    %730 = vmatpush1.bf16.msra.mxu0 0
    %731 = vmatprep.subr.bf16.mxu0 0
    %732 = vmatpush1.bf16.msra.mxu0 0
    %733 = vmatprep.subr.bf16.mxu0 0
    %734 = vmatpush1.bf16.msra.mxu0 0
    %735 = vmatprep.subr.bf16.mxu0 0
    %736 = vmatpush1.bf16.msra.mxu0 0
    %737 = vmatprep.subr.bf16.mxu0 0
    %738 = vmatpush1.bf16.msra.mxu0 0
    %739 = vmatprep.mubr.bf16.mxu0 0
    %740 = vmatmul.mubr.bf16.gmra.mrb[0].mxu0 %v408
    %v741 = vpop.f32.mrb[0].mxu0
    %v742 = vadd.f32 0.0, %v741
    %v743 = vpop.f32.mrb[0].mxu0
    %v744 = vpop.f32.mrb[0].mxu0
    %v745 = vadd.f32 0.0, %v744
    %v746 = vpop.f32.mrb[0].mxu0
    %747 = vmatprep.mubr.bf16.mxu0 0
    %748 = vmatmul.mubr.bf16.gmra.mrb[0].mxu0 %v411
    %v749 = vpop.f32.mrb[0].mxu0
    %v750 = vadd.f32 0.0, %v749
    %v751 = vpop.f32.mrb[0].mxu0
    %v752 = vpop.f32.mrb[0].mxu0
    %v753 = vadd.f32 0.0, %v752
    %v754 = vpop.f32.mrb[0].mxu0
    %755 = vdwg.mxu0
    %756 = vmatprep.subr.bf16.mxu0 0
    %757 = vmatpush1.bf16.msra.mxu0 %v396
    %758 = vmatprep.subr.bf16.mxu0 0
    %759 = vmatpush1.bf16.msra.mxu0 0
    %760 = vmatprep.subr.bf16.mxu0 0
    %761 = vmatpush1.bf16.msra.mxu0 0
    %762 = vmatprep.subr.bf16.mxu0 0
    %763 = vmatpush1.bf16.msra.mxu0 0
    %764 = vmatprep.subr.bf16.mxu0 0
    %765 = vmatpush1.bf16.msra.mxu0 0
    %766 = vmatprep.subr.bf16.mxu0 0
    %767 = vmatpush1.bf16.msra.mxu0 0
    %768 = vmatprep.subr.bf16.mxu0 0
    %769 = vmatpush1.bf16.msra.mxu0 0
    %770 = vmatprep.subr.bf16.mxu0 0
    %771 = vmatpush1.bf16.msra.mxu0 0
    %772 = vmatprep.subr.bf16.mxu0 0
    %773 = vmatpush1.bf16.msra.mxu0 0
    %774 = vmatprep.subr.bf16.mxu0 0
    %775 = vmatpush1.bf16.msra.mxu0 0
    %776 = vmatprep.subr.bf16.mxu0 0
    %777 = vmatpush1.bf16.msra.mxu0 0
    %778 = vmatprep.subr.bf16.mxu0 0
    %779 = vmatpush1.bf16.msra.mxu0 0
    %780 = vmatprep.subr.bf16.mxu0 0
    %781 = vmatpush1.bf16.msra.mxu0 0
    %782 = vmatprep.subr.bf16.mxu0 0
    %783 = vmatpush1.bf16.msra.mxu0 0
    %784 = vmatprep.subr.bf16.mxu0 0
    %785 = vmatpush1.bf16.msra.mxu0 0
    %786 = vmatprep.subr.bf16.mxu0 0
    %787 = vmatpush1.bf16.msra.mxu0 0
    %788 = vmatprep.mubr.bf16.mxu0 0
    %789 = vmatmul.mubr.bf16.gmra.mrb[0].mxu0 %v408
    %v790 = vpop.f32.mrb[0].mxu0
    %v791 = vadd.f32 0.0, %v790
    %v792 = vpop.f32.mrb[0].mxu0
    %v793 = vpop.f32.mrb[0].mxu0
    %v794 = vadd.f32 0.0, %v793
    %v795 = vpop.f32.mrb[0].mxu0
    %796 = vmatprep.mubr.bf16.mxu0 0
    %797 = vmatmul.mubr.bf16.gmra.mrb[0].mxu0 %v411
    %v798 = vpop.f32.mrb[0].mxu0
    %v799 = vadd.f32 0.0, %v798
    %v800 = vpop.f32.mrb[0].mxu0
    %v801 = vpop.f32.mrb[0].mxu0
    %v802 = vadd.f32 0.0, %v801
    %v803 = vpop.f32.mrb[0].mxu0
    %804 = vdwg.mxu0
    %805 = vmatprep.subr.bf16.mxu0 0
    %806 = vmatpush1.bf16.msra.mxu0 %v349
    %807 = vmatprep.subr.bf16.mxu0 0
    %808 = vmatpush1.bf16.msra.mxu0 0
    %809 = vmatprep.subr.bf16.mxu0 0
    %810 = vmatpush1.bf16.msra.mxu0 0
    %811 = vmatprep.subr.bf16.mxu0 0
    %812 = vmatpush1.bf16.msra.mxu0 0
    %813 = vmatprep.subr.bf16.mxu0 0
    %814 = vmatpush1.bf16.msra.mxu0 0
    %815 = vmatprep.subr.bf16.mxu0 0
    %816 = vmatpush1.bf16.msra.mxu0 0
    %817 = vmatprep.subr.bf16.mxu0 0
    %818 = vmatpush1.bf16.msra.mxu0 0
    %819 = vmatprep.subr.bf16.mxu0 0
    %820 = vmatpush1.bf16.msra.mxu0 0
    %821 = vmatprep.subr.bf16.mxu0 0
    %822 = vmatpush1.bf16.msra.mxu0 0
    %823 = vmatprep.subr.bf16.mxu0 0
    %824 = vmatpush1.bf16.msra.mxu0 0
    %825 = vmatprep.subr.bf16.mxu0 0
    %826 = vmatpush1.bf16.msra.mxu0 0
    %827 = vmatprep.subr.bf16.mxu0 0
    %828 = vmatpush1.bf16.msra.mxu0 0
    %829 = vmatprep.subr.bf16.mxu0 0
    %830 = vmatpush1.bf16.msra.mxu0 0
    %831 = vmatprep.subr.bf16.mxu0 0
    %832 = vmatpush1.bf16.msra.mxu0 0
    %833 = vmatprep.subr.bf16.mxu0 0
    %834 = vmatpush1.bf16.msra.mxu0 0
    %835 = vmatprep.subr.bf16.mxu0 0
    %836 = vmatpush1.bf16.msra.mxu0 0
    %837 = vmatprep.mubr.bf16.mxu0 0
    %838 = vmatmul.mubr.bf16.gmra.mrb[0].mxu0 %v408
    %v839 = vpop.f32.mrb[0].mxu0
    %v840 = vadd.f32 %v448, %v839
    %v841 = vpop.f32.mrb[0].mxu0
    %v842 = vpop.f32.mrb[0].mxu0
    %v843 = vadd.f32 %v451, %v842
    %v844 = vpop.f32.mrb[0].mxu0
    %845 = vmatprep.mubr.bf16.mxu0 0
    %846 = vmatmul.mubr.bf16.gmra.mrb[0].mxu0 %v411
    %v847 = vpop.f32.mrb[0].mxu0
    %v848 = vadd.f32 %v456, %v847
    %v849 = vpop.f32.mrb[0].mxu0
    %v850 = vpop.f32.mrb[0].mxu0
    %v851 = vadd.f32 %v459, %v850
    %v852 = vpop.f32.mrb[0].mxu0
    %853 = vdwg.mxu0
    %854 = vmatprep.subr.bf16.mxu0 0
    %855 = vmatpush1.bf16.msra.mxu0 %v350
    %856 = vmatprep.subr.bf16.mxu0 0
    %857 = vmatpush1.bf16.msra.mxu0 0
    %858 = vmatprep.subr.bf16.mxu0 0
    %859 = vmatpush1.bf16.msra.mxu0 0
    %860 = vmatprep.subr.bf16.mxu0 0
    %861 = vmatpush1.bf16.msra.mxu0 0
    %862 = vmatprep.subr.bf16.mxu0 0
    %863 = vmatpush1.bf16.msra.mxu0 0
    %864 = vmatprep.subr.bf16.mxu0 0
    %865 = vmatpush1.bf16.msra.mxu0 0
    %866 = vmatprep.subr.bf16.mxu0 0
    %867 = vmatpush1.bf16.msra.mxu0 0
    %868 = vmatprep.subr.bf16.mxu0 0
    %869 = vmatpush1.bf16.msra.mxu0 0
    %870 = vmatprep.subr.bf16.mxu0 0
    %871 = vmatpush1.bf16.msra.mxu0 0
    %872 = vmatprep.subr.bf16.mxu0 0
    %873 = vmatpush1.bf16.msra.mxu0 0
    %874 = vmatprep.subr.bf16.mxu0 0
    %875 = vmatpush1.bf16.msra.mxu0 0
    %876 = vmatprep.subr.bf16.mxu0 0
    %877 = vmatpush1.bf16.msra.mxu0 0
    %878 = vmatprep.subr.bf16.mxu0 0
    %879 = vmatpush1.bf16.msra.mxu0 0
    %880 = vmatprep.subr.bf16.mxu0 0
    %881 = vmatpush1.bf16.msra.mxu0 0
    %882 = vmatprep.subr.bf16.mxu0 0
    %883 = vmatpush1.bf16.msra.mxu0 0
    %884 = vmatprep.subr.bf16.mxu0 0
    %885 = vmatpush1.bf16.msra.mxu0 0
    %886 = vmatprep.mubr.bf16.mxu0 0
    %887 = vmatmul.mubr.bf16.gmra.mrb[0].mxu0 %v408
    %v888 = vpop.f32.mrb[0].mxu0
    %v889 = vadd.f32 %v497, %v888
    %v890 = vpop.f32.mrb[0].mxu0
    %v891 = vpop.f32.mrb[0].mxu0
    %v892 = vadd.f32 %v500, %v891
    %v893 = vpop.f32.mrb[0].mxu0
    %894 = vmatprep.mubr.bf16.mxu0 0
    %895 = vmatmul.mubr.bf16.gmra.mrb[0].mxu0 %v411
    %v896 = vpop.f32.mrb[0].mxu0
    %v897 = vadd.f32 %v505, %v896
    %v898 = vpop.f32.mrb[0].mxu0
    %v899 = vpop.f32.mrb[0].mxu0
    %v900 = vadd.f32 %v508, %v899
    %v901 = vpop.f32.mrb[0].mxu0
    %902 = vdwg.mxu0
    %903 = vmatprep.subr.bf16.mxu0 0
    %904 = vmatpush1.bf16.msra.mxu0 %v351
    %905 = vmatprep.subr.bf16.mxu0 0
    %906 = vmatpush1.bf16.msra.mxu0 0
    %907 = vmatprep.subr.bf16.mxu0 0
    %908 = vmatpush1.bf16.msra.mxu0 0
    %909 = vmatprep.subr.bf16.mxu0 0
    %910 = vmatpush1.bf16.msra.mxu0 0
    %911 = vmatprep.subr.bf16.mxu0 0
    %912 = vmatpush1.bf16.msra.mxu0 0
    %913 = vmatprep.subr.bf16.mxu0 0
    %914 = vmatpush1.bf16.msra.mxu0 0
    %915 = vmatprep.subr.bf16.mxu0 0
    %916 = vmatpush1.bf16.msra.mxu0 0
    %917 = vmatprep.subr.bf16.mxu0 0
    %918 = vmatpush1.bf16.msra.mxu0 0
    %919 = vmatprep.subr.bf16.mxu0 0
    %920 = vmatpush1.bf16.msra.mxu0 0
    %921 = vmatprep.subr.bf16.mxu0 0
    %922 = vmatpush1.bf16.msra.mxu0 0
    %923 = vmatprep.subr.bf16.mxu0 0
    %924 = vmatpush1.bf16.msra.mxu0 0
    %925 = vmatprep.subr.bf16.mxu0 0
    %926 = vmatpush1.bf16.msra.mxu0 0
    %927 = vmatprep.subr.bf16.mxu0 0
    %928 = vmatpush1.bf16.msra.mxu0 0
    %929 = vmatprep.subr.bf16.mxu0 0
    %930 = vmatpush1.bf16.msra.mxu0 0
    %931 = vmatprep.subr.bf16.mxu0 0
    %932 = vmatpush1.bf16.msra.mxu0 0
    %933 = vmatprep.subr.bf16.mxu0 0
    %934 = vmatpush1.bf16.msra.mxu0 0
    %935 = vmatprep.mubr.bf16.mxu0 0
    %936 = vmatmul.mubr.bf16.gmra.mrb[0].mxu0 %v408
    %v937 = vpop.f32.mrb[0].mxu0
    %v938 = vadd.f32 %v546, %v937
    %v939 = vpop.f32.mrb[0].mxu0
    %v940 = vpop.f32.mrb[0].mxu0
    %v941 = vadd.f32 %v549, %v940
    %v942 = vpop.f32.mrb[0].mxu0
    %943 = vmatprep.mubr.bf16.mxu0 0
    %944 = vmatmul.mubr.bf16.gmra.mrb[0].mxu0 %v411
    %v945 = vpop.f32.mrb[0].mxu0
    %v946 = vadd.f32 %v554, %v945
    %v947 = vpop.f32.mrb[0].mxu0
    %v948 = vpop.f32.mrb[0].mxu0
    %v949 = vadd.f32 %v557, %v948
    %v950 = vpop.f32.mrb[0].mxu0
    %951 = vdwg.mxu0
    %952 = vmatprep.subr.bf16.mxu0 0
    %953 = vmatpush1.bf16.msra.mxu0 %v352
    %954 = vmatprep.subr.bf16.mxu0 0
    %955 = vmatpush1.bf16.msra.mxu0 0
    %956 = vmatprep.subr.bf16.mxu0 0
    %957 = vmatpush1.bf16.msra.mxu0 0
    %958 = vmatprep.subr.bf16.mxu0 0
    %959 = vmatpush1.bf16.msra.mxu0 0
    %960 = vmatprep.subr.bf16.mxu0 0
    %961 = vmatpush1.bf16.msra.mxu0 0
    %962 = vmatprep.subr.bf16.mxu0 0
    %963 = vmatpush1.bf16.msra.mxu0 0
    %964 = vmatprep.subr.bf16.mxu0 0
    %965 = vmatpush1.bf16.msra.mxu0 0
    %966 = vmatprep.subr.bf16.mxu0 0
    %967 = vmatpush1.bf16.msra.mxu0 0
    %968 = vmatprep.subr.bf16.mxu0 0
    %969 = vmatpush1.bf16.msra.mxu0 0
    %970 = vmatprep.subr.bf16.mxu0 0
    %971 = vmatpush1.bf16.msra.mxu0 0
    %972 = vmatprep.subr.bf16.mxu0 0
    %973 = vmatpush1.bf16.msra.mxu0 0
    %974 = vmatprep.subr.bf16.mxu0 0
    %975 = vmatpush1.bf16.msra.mxu0 0
    %976 = vmatprep.subr.bf16.mxu0 0
    %977 = vmatpush1.bf16.msra.mxu0 0
    %978 = vmatprep.subr.bf16.mxu0 0
    %979 = vmatpush1.bf16.msra.mxu0 0
    %980 = vmatprep.subr.bf16.mxu0 0
    %981 = vmatpush1.bf16.msra.mxu0 0
    %982 = vmatprep.subr.bf16.mxu0 0
    %983 = vmatpush1.bf16.msra.mxu0 0
    %984 = vmatprep.mubr.bf16.mxu0 0
    %985 = vmatmul.mubr.bf16.gmra.mrb[0].mxu0 %v408
    %v986 = vpop.f32.mrb[0].mxu0
    %v987 = vadd.f32 %v595, %v986
    %v988 = vpop.f32.mrb[0].mxu0
    %v989 = vpop.f32.mrb[0].mxu0
    %v990 = vadd.f32 %v598, %v989
    %v991 = vpop.f32.mrb[0].mxu0
    %992 = vmatprep.mubr.bf16.mxu0 0
    %993 = vmatmul.mubr.bf16.gmra.mrb[0].mxu0 %v411
    %v994 = vpop.f32.mrb[0].mxu0
    %v995 = vadd.f32 %v603, %v994
    %v996 = vpop.f32.mrb[0].mxu0
    %v997 = vpop.f32.mrb[0].mxu0
    %v998 = vadd.f32 %v606, %v997
    %v999 = vpop.f32.mrb[0].mxu0
    %1000 = vdwg.mxu0
    %1001 = vmatprep.subr.bf16.mxu0 0
    %1002 = vmatpush1.bf16.msra.mxu0 %v353
    %1003 = vmatprep.subr.bf16.mxu0 0
    %1004 = vmatpush1.bf16.msra.mxu0 0
    %1005 = vmatprep.subr.bf16.mxu0 0
    %1006 = vmatpush1.bf16.msra.mxu0 0
    %1007 = vmatprep.subr.bf16.mxu0 0
    %1008 = vmatpush1.bf16.msra.mxu0 0
    %1009 = vmatprep.subr.bf16.mxu0 0
    %1010 = vmatpush1.bf16.msra.mxu0 0
    %1011 = vmatprep.subr.bf16.mxu0 0
    %1012 = vmatpush1.bf16.msra.mxu0 0
    %1013 = vmatprep.subr.bf16.mxu0 0
    %1014 = vmatpush1.bf16.msra.mxu0 0
    %1015 = vmatprep.subr.bf16.mxu0 0
    %1016 = vmatpush1.bf16.msra.mxu0 0
    %1017 = vmatprep.subr.bf16.mxu0 0
    %1018 = vmatpush1.bf16.msra.mxu0 0
    %1019 = vmatprep.subr.bf16.mxu0 0
    %1020 = vmatpush1.bf16.msra.mxu0 0
    %1021 = vmatprep.subr.bf16.mxu0 0
    %1022 = vmatpush1.bf16.msra.mxu0 0
    %1023 = vmatprep.subr.bf16.mxu0 0
    %1024 = vmatpush1.bf16.msra.mxu0 0
    %1025 = vmatprep.subr.bf16.mxu0 0
    %1026 = vmatpush1.bf16.msra.mxu0 0
    %1027 = vmatprep.subr.bf16.mxu0 0
    %1028 = vmatpush1.bf16.msra.mxu0 0
    %1029 = vmatprep.subr.bf16.mxu0 0
    %1030 = vmatpush1.bf16.msra.mxu0 0
    %1031 = vmatprep.subr.bf16.mxu0 0
    %1032 = vmatpush1.bf16.msra.mxu0 0
    %1033 = vmatprep.mubr.bf16.mxu0 0
    %1034 = vmatmul.mubr.bf16.gmra.mrb[0].mxu0 %v408
    %v1035 = vpop.f32.mrb[0].mxu0
    %v1036 = vadd.f32 %v644, %v1035
    %v1037 = vpop.f32.mrb[0].mxu0
    %v1038 = vpop.f32.mrb[0].mxu0
    %v1039 = vadd.f32 %v647, %v1038
    %v1040 = vpop.f32.mrb[0].mxu0
    %1041 = vmatprep.mubr.bf16.mxu0 0
    %1042 = vmatmul.mubr.bf16.gmra.mrb[0].mxu0 %v411
    %v1043 = vpop.f32.mrb[0].mxu0
    %v1044 = vadd.f32 %v652, %v1043
    %v1045 = vpop.f32.mrb[0].mxu0
    %v1046 = vpop.f32.mrb[0].mxu0
    %v1047 = vadd.f32 %v655, %v1046
    %v1048 = vpop.f32.mrb[0].mxu0
    %1049 = vdwg.mxu0
    %1050 = vmatprep.subr.bf16.mxu0 0
    %1051 = vmatpush1.bf16.msra.mxu0 %v354
    %1052 = vmatprep.subr.bf16.mxu0 0
    %1053 = vmatpush1.bf16.msra.mxu0 0
    %1054 = vmatprep.subr.bf16.mxu0 0
    %1055 = vmatpush1.bf16.msra.mxu0 0
    %1056 = vmatprep.subr.bf16.mxu0 0
    %1057 = vmatpush1.bf16.msra.mxu0 0
    %1058 = vmatprep.subr.bf16.mxu0 0
    %1059 = vmatpush1.bf16.msra.mxu0 0
    %1060 = vmatprep.subr.bf16.mxu0 0
    %1061 = vmatpush1.bf16.msra.mxu0 0
    %1062 = vmatprep.subr.bf16.mxu0 0
    %1063 = vmatpush1.bf16.msra.mxu0 0
    %1064 = vmatprep.subr.bf16.mxu0 0
    %1065 = vmatpush1.bf16.msra.mxu0 0
    %1066 = vmatprep.subr.bf16.mxu0 0
    %1067 = vmatpush1.bf16.msra.mxu0 0
    %1068 = vmatprep.subr.bf16.mxu0 0
    %1069 = vmatpush1.bf16.msra.mxu0 0
    %1070 = vmatprep.subr.bf16.mxu0 0
    %1071 = vmatpush1.bf16.msra.mxu0 0
    %1072 = vmatprep.subr.bf16.mxu0 0
    %1073 = vmatpush1.bf16.msra.mxu0 0
    %1074 = vmatprep.subr.bf16.mxu0 0
    %1075 = vmatpush1.bf16.msra.mxu0 0
    %1076 = vmatprep.subr.bf16.mxu0 0
    %1077 = vmatpush1.bf16.msra.mxu0 0
    %1078 = vmatprep.subr.bf16.mxu0 0
    %1079 = vmatpush1.bf16.msra.mxu0 0
    %1080 = vmatprep.subr.bf16.mxu0 0
    %1081 = vmatpush1.bf16.msra.mxu0 0
    %1082 = vmatprep.mubr.bf16.mxu0 0
    %1083 = vmatmul.mubr.bf16.gmra.mrb[0].mxu0 %v408
    %v1084 = vpop.f32.mrb[0].mxu0
    %v1085 = vadd.f32 %v693, %v1084
    %v1086 = vpop.f32.mrb[0].mxu0
    %v1087 = vpop.f32.mrb[0].mxu0
    %v1088 = vadd.f32 %v696, %v1087
    %v1089 = vpop.f32.mrb[0].mxu0
    %1090 = vmatprep.mubr.bf16.mxu0 0
    %1091 = vmatmul.mubr.bf16.gmra.mrb[0].mxu0 %v411
    %v1092 = vpop.f32.mrb[0].mxu0
    %v1093 = vadd.f32 %v701, %v1092
    %v1094 = vpop.f32.mrb[0].mxu0
    %v1095 = vpop.f32.mrb[0].mxu0
    %v1096 = vadd.f32 %v704, %v1095
    %v1097 = vpop.f32.mrb[0].mxu0
    %1098 = vdwg.mxu0
    %1099 = vmatprep.subr.bf16.mxu0 0
    %1100 = vmatpush1.bf16.msra.mxu0 %v355
    %1101 = vmatprep.subr.bf16.mxu0 0
    %1102 = vmatpush1.bf16.msra.mxu0 0
    %1103 = vmatprep.subr.bf16.mxu0 0
    %1104 = vmatpush1.bf16.msra.mxu0 0
    %1105 = vmatprep.subr.bf16.mxu0 0
    %1106 = vmatpush1.bf16.msra.mxu0 0
    %1107 = vmatprep.subr.bf16.mxu0 0
    %1108 = vmatpush1.bf16.msra.mxu0 0
    %1109 = vmatprep.subr.bf16.mxu0 0
    %1110 = vmatpush1.bf16.msra.mxu0 0
    %1111 = vmatprep.subr.bf16.mxu0 0
    %1112 = vmatpush1.bf16.msra.mxu0 0
    %1113 = vmatprep.subr.bf16.mxu0 0
    %1114 = vmatpush1.bf16.msra.mxu0 0
    %1115 = vmatprep.subr.bf16.mxu0 0
    %1116 = vmatpush1.bf16.msra.mxu0 0
    %1117 = vmatprep.subr.bf16.mxu0 0
    %1118 = vmatpush1.bf16.msra.mxu0 0
    %1119 = vmatprep.subr.bf16.mxu0 0
    %1120 = vmatpush1.bf16.msra.mxu0 0
    %1121 = vmatprep.subr.bf16.mxu0 0
    %1122 = vmatpush1.bf16.msra.mxu0 0
    %1123 = vmatprep.subr.bf16.mxu0 0
    %1124 = vmatpush1.bf16.msra.mxu0 0
    %1125 = vmatprep.subr.bf16.mxu0 0
    %1126 = vmatpush1.bf16.msra.mxu0 0
    %1127 = vmatprep.subr.bf16.mxu0 0
    %1128 = vmatpush1.bf16.msra.mxu0 0
    %1129 = vmatprep.subr.bf16.mxu0 0
    %1130 = vmatpush1.bf16.msra.mxu0 0
    %1131 = vmatprep.mubr.bf16.mxu0 0
    %1132 = vmatmul.mubr.bf16.gmra.mrb[0].mxu0 %v408
    %v1133 = vpop.f32.mrb[0].mxu0
    %v1134 = vadd.f32 %v742, %v1133
    %v1135 = vpop.f32.mrb[0].mxu0
    %v1136 = vpop.f32.mrb[0].mxu0
    %v1137 = vadd.f32 %v745, %v1136
    %v1138 = vpop.f32.mrb[0].mxu0
    %1139 = vmatprep.mubr.bf16.mxu0 0
    %1140 = vmatmul.mubr.bf16.gmra.mrb[0].mxu0 %v411
    %v1141 = vpop.f32.mrb[0].mxu0
    %v1142 = vadd.f32 %v750, %v1141
    %v1143 = vpop.f32.mrb[0].mxu0
    %v1144 = vpop.f32.mrb[0].mxu0
    %v1145 = vadd.f32 %v753, %v1144
    %v1146 = vpop.f32.mrb[0].mxu0
    %1147 = vdwg.mxu0
    %1148 = vmatprep.subr.bf16.mxu0 0
    %1149 = vmatpush1.bf16.msra.mxu0 %v356
    %1150 = vmatprep.subr.bf16.mxu0 0
    %1151 = vmatpush1.bf16.msra.mxu0 0
    %1152 = vmatprep.subr.bf16.mxu0 0
    %1153 = vmatpush1.bf16.msra.mxu0 0
    %1154 = vmatprep.subr.bf16.mxu0 0
    %1155 = vmatpush1.bf16.msra.mxu0 0
    %1156 = vmatprep.subr.bf16.mxu0 0
    %1157 = vmatpush1.bf16.msra.mxu0 0
    %1158 = vmatprep.subr.bf16.mxu0 0
    %1159 = vmatpush1.bf16.msra.mxu0 0
    %1160 = vmatprep.subr.bf16.mxu0 0
    %1161 = vmatpush1.bf16.msra.mxu0 0
    %1162 = vmatprep.subr.bf16.mxu0 0
    %1163 = vmatpush1.bf16.msra.mxu0 0
    %1164 = vmatprep.subr.bf16.mxu0 0
    %1165 = vmatpush1.bf16.msra.mxu0 0
    %1166 = vmatprep.subr.bf16.mxu0 0
    %1167 = vmatpush1.bf16.msra.mxu0 0
    %1168 = vmatprep.subr.bf16.mxu0 0
    %1169 = vmatpush1.bf16.msra.mxu0 0
    %1170 = vmatprep.subr.bf16.mxu0 0
    %1171 = vmatpush1.bf16.msra.mxu0 0
    %1172 = vmatprep.subr.bf16.mxu0 0
    %1173 = vmatpush1.bf16.msra.mxu0 0
    %1174 = vmatprep.subr.bf16.mxu0 0
    %1175 = vmatpush1.bf16.msra.mxu0 0
    %1176 = vmatprep.subr.bf16.mxu0 0
    %1177 = vmatpush1.bf16.msra.mxu0 0
    %1178 = vmatprep.subr.bf16.mxu0 0
    %1179 = vmatpush1.bf16.msra.mxu0 0
    %1180 = vmatprep.mubr.bf16.mxu0 0
    %1181 = vmatmul.mubr.bf16.gmra.mrb[0].mxu0 %v408
    %v1182 = vpop.f32.mrb[0].mxu0
    %v1183 = vadd.f32 %v791, %v1182
    %v1184 = vpop.f32.mrb[0].mxu0
    %v1185 = vpop.f32.mrb[0].mxu0
    %v1186 = vadd.f32 %v794, %v1185
    %v1187 = vpop.f32.mrb[0].mxu0
    %1188 = vmatprep.mubr.bf16.mxu0 0
    %1189 = vmatmul.mubr.bf16.gmra.mrb[0].mxu0 %v411
    %v1190 = vpop.f32.mrb[0].mxu0
    %v1191 = vadd.f32 %v799, %v1190
    %v1192 = vpop.f32.mrb[0].mxu0
    %v1193 = vpop.f32.mrb[0].mxu0
    %v1194 = vadd.f32 %v802, %v1193
    %v1195 = vpop.f32.mrb[0].mxu0
    %1196 = vdwg.mxu0
    %vm1197 = vcmask 261120
    %1198 = vst.msk [vmem:[#allocation5] sm:$0xff] %vm1197, %v840
    %1199 = vst.msk [vmem:[#allocation5 + $0x8] sm:$0xff] %vm1197, %v843
    %1200 = vst.msk [vmem:[#allocation5 + $0x10] sm:$0xff] %vm1197, %v848
    %1201 = vst.msk [vmem:[#allocation5 + $0x18] sm:$0xff] %vm1197, %v851
    %1202 = vst.msk [vmem:[#allocation5 + $0x20] sm:$0xff] %vm1197, %v889
    %1203 = vst.msk [vmem:[#allocation5 + $0x28] sm:$0xff] %vm1197, %v892
    %1204 = vst.msk [vmem:[#allocation5 + $0x30] sm:$0xff] %vm1197, %v897
    %1205 = vst.msk [vmem:[#allocation5 + $0x38] sm:$0xff] %vm1197, %v900
    %1206 = vst.msk [vmem:[#allocation5 + $0x40] sm:$0xff] %vm1197, %v938
    %1207 = vst.msk [vmem:[#allocation5 + $0x48] sm:$0xff] %vm1197, %v941
    %1208 = vst.msk [vmem:[#allocation5 + $0x50] sm:$0xff] %vm1197, %v946
    %1209 = vst.msk [vmem:[#allocation5 + $0x58] sm:$0xff] %vm1197, %v949
    %1210 = vst.msk [vmem:[#allocation5 + $0x60] sm:$0xff] %vm1197, %v987
    %1211 = vst.msk [vmem:[#allocation5 + $0x68] sm:$0xff] %vm1197, %v990
    %1212 = vst.msk [vmem:[#allocation5 + $0x70] sm:$0xff] %vm1197, %v995
    %1213 = vst.msk [vmem:[#allocation5 + $0x78] sm:$0xff] %vm1197, %v998
    %1214 = vst.msk [vmem:[#allocation5 + $0x80] sm:$0xff] %vm1197, %v1036
    %1215 = vst.msk [vmem:[#allocation5 + $0x88] sm:$0xff] %vm1197, %v1039
    %1216 = vst.msk [vmem:[#allocation5 + $0x90] sm:$0xff] %vm1197, %v1044
    %1217 = vst.msk [vmem:[#allocation5 + $0x98] sm:$0xff] %vm1197, %v1047
    %1218 = vst.msk [vmem:[#allocation5 + $0xa0] sm:$0xff] %vm1197, %v1085
    %1219 = vst.msk [vmem:[#allocation5 + $0xa8] sm:$0xff] %vm1197, %v1088
    %1220 = vst.msk [vmem:[#allocation5 + $0xb0] sm:$0xff] %vm1197, %v1093
    %1221 = vst.msk [vmem:[#allocation5 + $0xb8] sm:$0xff] %vm1197, %v1096
    %1222 = vst.msk [vmem:[#allocation5 + $0xc0] sm:$0xff] %vm1197, %v1134
    %1223 = vst.msk [vmem:[#allocation5 + $0xc8] sm:$0xff] %vm1197, %v1137
    %1224 = vst.msk [vmem:[#allocation5 + $0xd0] sm:$0xff] %vm1197, %v1142
    %1225 = vst.msk [vmem:[#allocation5 + $0xd8] sm:$0xff] %vm1197, %v1145
    %1226 = vst.msk [vmem:[#allocation5 + $0xe0] sm:$0xff] %vm1197, %v1183
    %1227 = vst.msk [vmem:[#allocation5 + $0xe8] sm:$0xff] %vm1197, %v1186
    %1228 = vst.msk [vmem:[#allocation5 + $0xf0] sm:$0xff] %vm1197, %v1191
    %1229 = vst.msk [vmem:[#allocation5 + $0xf8] sm:$0xff] %vm1197, %v1194
    // Predicated region
    $region18: #{tpu_custom_call.1} parent=1 // pred_check
      _
    $region19: #{tpu_custom_call.1} parent=1 // pred_check_branch
      %1231 = sbr.rel (0) target = $region21
    $region20: #{tpu_custom_call.1} parent=1 // pred_region
      %s1233 = ssub.s32 4096, 4096
      %1234 = vsyncadd [#allocation4], %s1233
      %s1235 = sshll.u32 [#allocation5], 4
      %s1236 = int_to_ptr.vmem [resolvable:$true] %s1235
      %1241 = dma.vmem_to_hbm [thread:$0]  %s1236, 4096, %s3, [#allocation4], 128, 128, 8
    $region21: #{tpu_custom_call.1} parent=1 // pred_fallthru
      _
    // Predicated region
    $region22: #{tpu_custom_call.1} parent=1 // pred_check
      _
    $region23: #{tpu_custom_call.1} parent=1 // pred_check_branch
      %1243 = sbr.rel (0) target = $region25
    $region24: #{tpu_custom_call.1} parent=1 // pred_region
      %1244 = dma.done [#allocation4], 4096
    $region25: #{tpu_custom_call.1} parent=1 // pred_fallthru
      _
    %1245 = vsyncpa [#allocation3], 1
    %1246 = vsyncpa [#allocation4], 1

</llo_original>
